<compile_context>
chip_gen: v6e
topology: v6e:2x2x1
jax: 0.10.0
libtpu: 0.0.40
codegen_flags: <defaults>
</compile_context>

<pallas_src>
import functools

import jax
import jax.numpy as jnp
from jax import lax
from jax.experimental import pallas as pl
from jax.experimental.pallas import tpu as pltpu

LANES = 128           # lane width
MAX_BLOCK_ROWS = 1024 # (1024, 128) f32 block = 512 KiB per buffer
NUM_SPLITS = 2        # megacore split of the reduction sweep (v7x); safe on 1-TC chips


def _l1_reduce_kernel(pred_ref, targ_ref, out_ref, acc_ref, *,
                      total_rows, block_rows, blocks_per_split):
    """Per-split accumulation of sum(|pred - target|) into a vector accumulator."""
    s = pl.program_id(0)   # split (parallel across cores on v7x)
    k = pl.program_id(1)   # block within the split (reduction axis)

    @pl.when(k == 0)
    def _():
        acc_ref[...] = jnp.zeros_like(acc_ref)

    # Row offset of this *logical* block.  It may exceed total_rows for the
    # trailing steps of the last split (or for partial last blocks); the row
    # mask zeroes every out-of-range row so garbage never enters the sum.
    row_off = (s * blocks_per_split + k) * block_rows
    valid = total_rows - row_off
    row_ids = lax.broadcasted_iota(jnp.int32, (block_rows, 1), 0)
    mask = row_ids < valid

    diff = jnp.abs(pred_ref[...].astype(jnp.float32)
                   - targ_ref[...].astype(jnp.float32))
    acc_ref[...] += jnp.where(mask, diff, 0.0)          # pure VPU per step

    @pl.when(k == pl.num_programs(1) - 1)
    def _():
        # Single cross-sublane reduce per split; cross-lane reduce (128 per
        # split) is done by the wrapper on a tiny array.
        out_ref[...] = jnp.sum(acc_ref[...], axis=0, keepdims=True)[None]


def _l1_elementwise_kernel(pred_ref, targ_ref, out_ref, *, loss_weight):
    diff = jnp.abs(pred_ref[...].astype(jnp.float32)
                   - targ_ref[...].astype(jnp.float32))
    out_ref[...] = (loss_weight * diff).astype(out_ref.dtype)


def l1_loss(pred, target, loss_weight=1.0, reduction="mean"):
    """Pallas implementation of L1Loss.forward."""
    if reduction not in ("none", "mean", "sum"):
        raise ValueError(f"Unsupported reduction mode: {reduction}")
    # TODO(synk): the optional elementwise `weight` argument of the PyTorch
    # forward is not implemented (the reference forward ignores it as well).

    orig_shape = pred.shape
    n_elems = pred.size
    out_dtype = pred.dtype

    pred_f = pred.reshape(-1)
    targ_f = target.reshape(-1)

    # Only pad when the element count is not lane-aligned (rare); zero padding
    # contributes 0 to |pred - target| so the reduction stays exact.
    pad = (-n_elems) % LANES
    if pad:
        pred_f = jnp.pad(pred_f, (0, pad))
        targ_f = jnp.pad(targ_f, (0, pad))
    rows = (n_elems + pad) // LANES
    pred2d = pred_f.reshape(rows, LANES)
    targ2d = targ_f.reshape(rows, LANES)

    # Big blocks: either the whole slab (small inputs) or 1024 rows.
    block_rows = min(rows, MAX_BLOCK_ROWS)
    nblocks = pl.cdiv(rows, block_rows)

    if reduction == "none":
        out2d = pl.pallas_call(
            functools.partial(_l1_elementwise_kernel,
                              loss_weight=float(loss_weight)),
            out_shape=jax.ShapeDtypeStruct((rows, LANES), out_dtype),
            grid=(nblocks,),
            in_specs=[pl.BlockSpec((block_rows, LANES), lambda i: (i, 0)),
                      pl.BlockSpec((block_rows, LANES), lambda i: (i, 0))],
            out_specs=pl.BlockSpec((block_rows, LANES), lambda i: (i, 0)),
            compiler_params=pltpu.CompilerParams(
                dimension_semantics=("parallel",)),
        )(pred2d, targ2d)
        if pad:
            return out2d.reshape(-1)[:n_elems].reshape(orig_shape)
        return out2d.reshape(orig_shape)

    # Reduction path: 2-way parallel split (v7x megacore) x sequential sweep.
    blocks_per_split = pl.cdiv(nblocks, NUM_SPLITS)

    def in_map(s, k):
        # Clamp so logical blocks past the end of the array re-read the last
        # valid block (the in-kernel mask zeroes their contribution).
        return (jnp.minimum(s * blocks_per_split + k, nblocks - 1), 0)

    partials = pl.pallas_call(
        functools.partial(_l1_reduce_kernel,
                          total_rows=rows,
                          block_rows=block_rows,
                          blocks_per_split=blocks_per_split),
        out_shape=jax.ShapeDtypeStruct((NUM_SPLITS, 1, LANES), jnp.float32),
        grid=(NUM_SPLITS, blocks_per_split),
        in_specs=[pl.BlockSpec((block_rows, LANES), in_map),
                  pl.BlockSpec((block_rows, LANES), in_map)],
        out_specs=pl.BlockSpec((1, 1, LANES), lambda s, k: (s, 0, 0)),
        scratch_shapes=[pltpu.VMEM((block_rows, LANES), jnp.float32)],
        compiler_params=pltpu.CompilerParams(
            dimension_semantics=("parallel", "arbitrary")),
    )(pred2d, targ2d)

    total = jnp.sum(partials)                 # tiny (2*128) final reduce
    scale = loss_weight / n_elems if reduction == "mean" else loss_weight
    return (total * scale).astype(out_dtype)  # 0-dim scalar, PyTorch-like


if __name__ == "__main__":
    key = jax.random.PRNGKey(0)
    k1, k2 = jax.random.split(key)
    # Module forward expects (N, C, H, W) tensors.
    pred = jax.random.normal(k1, (2, 4, 16, 16), dtype=jnp.float32)
    target = jax.random.normal(k2, (2, 4, 16, 16), dtype=jnp.float32)

    loss_weight = 1.0

    loss_mean = l1_loss(pred, target, loss_weight=loss_weight, reduction="mean")
    loss_sum = l1_loss(pred, target, loss_weight=loss_weight, reduction="sum")
    loss_none = l1_loss(pred, target, loss_weight=loss_weight, reduction="none")
    jax.block_until_ready((loss_mean, loss_sum, loss_none))

    # Cross-check against pure-JAX references.
    ref_mean = loss_weight * jnp.mean(jnp.abs(pred - target))
    ref_sum = loss_weight * jnp.sum(jnp.abs(pred - target))
    ref_none = loss_weight * jnp.abs(pred - target)
    assert jnp.allclose(loss_mean, ref_mean, rtol=1e-5, atol=1e-6), (loss_mean, ref_mean)
    assert jnp.allclose(loss_sum, ref_sum, rtol=1e-5, atol=1e-4), (loss_sum, ref_sum)
    assert jnp.allclose(loss_none, ref_none, rtol=1e-5, atol=1e-6)

    print("KERNEL_OK")
</pallas_src>

<mosaic_0001>
module attributes {stable_mosaic.version = 11 : i64} {
  func.func @_l1_reduce_kernel(%arg0: i32, %arg1: i32, %arg2: memref<16x128xf32, #tpu.memory_space<vmem>>, %arg3: memref<16x128xf32, #tpu.memory_space<vmem>>, %arg4: memref<1x1x128xf32, #tpu.memory_space<vmem>>, %arg5: memref<16x128xf32, #tpu.memory_space<vmem>>) attributes {dimension_semantics = [#tpu.dimension_semantics<parallel>, #tpu.dimension_semantics<arbitrary>], iteration_bounds = array<i64: 2, 1>, scalar_prefetch = 0 : i64, scratch_operands = 1 : i64, tpu.core_type = #tpu.core_type<tc>, window_params = [{transform_indices = @transform_0, window_bounds = array<i64: 16, 128>}, {transform_indices = @transform_1, window_bounds = array<i64: 16, 128>}, {transform_indices = @transform_2, window_bounds = array<i64: 1, 1, 128>}]} {
    %c0_i32 = arith.constant 0 : i32
    %0 = arith.cmpi eq, %arg1, %c0_i32 : i32
    %1 = arith.extui %0 : i1 to i32
    %c0_i32_0 = arith.constant 0 : i32
    %2 = arith.cmpi ne, %1, %c0_i32_0 : i32
    scf.if %2 {
      %cst_11 = arith.constant 0.000000e+00 : f32
      %24 = vector.broadcast %cst_11 : f32 to vector<16x128xf32>
      %c0_12 = arith.constant 0 : index
      %c0_13 = arith.constant 0 : index
      %25 = vector.load %arg5[%c0_12, %c0_13] : memref<16x128xf32, #tpu.memory_space<vmem>>, vector<16x128xf32>
      tpu.vector_store %arg5[%c0_12, %c0_13], %24 {strides = array<i32>} : memref<16x128xf32, #tpu.memory_space<vmem>>, vector<16x128xf32>,
    } else {
    }
    %c1_i32 = arith.constant 1 : i32
    %3 = arith.muli %arg0, %c1_i32 : i32
    %4 = arith.addi %3, %arg1 : i32
    %c16_i32 = arith.constant 16 : i32
    %5 = arith.muli %4, %c16_i32 : i32
    %c16_i32_1 = arith.constant 16 : i32
    %6 = arith.subi %c16_i32_1, %5 : i32
    %7 = tpu.iota {dimensions = array<i32: 0>} : vector<16x1xi32>
    %8 = vector.broadcast %6 : i32 to vector<16x1xi32>
    %9 = arith.cmpi slt, %7, %8 : vector<16x1xi32>
    %c0 = arith.constant 0 : index
    %c0_2 = arith.constant 0 : index
    %10 = vector.load %arg2[%c0, %c0_2] : memref<16x128xf32, #tpu.memory_space<vmem>>, vector<16x128xf32>
    %c0_3 = arith.constant 0 : index
    %c0_4 = arith.constant 0 : index
    %11 = vector.load %arg3[%c0_3, %c0_4] : memref<16x128xf32, #tpu.memory_space<vmem>>, vector<16x128xf32>
    %12 = arith.subf %10, %11 : vector<16x128xf32>
    %13 = math.absf %12 : vector<16x128xf32>
    %c0_5 = arith.constant 0 : index
    %c0_6 = arith.constant 0 : index
    %14 = vector.load %arg5[%c0_5, %c0_6] : memref<16x128xf32, #tpu.memory_space<vmem>>, vector<16x128xf32>
    %cst = arith.constant 0.000000e+00 : f32
    %15 = vector.shape_cast %9 : vector<16x1xi1> to vector<16x1xi1>
    %16 = vector.broadcast %15 : vector<16x1xi1> to vector<16x128xi1>
    %17 = vector.broadcast %cst : f32 to vector<16x128xf32>
    %18 = arith.select %16, %13, %17 : vector<16x128xi1>, vector<16x128xf32>
    %19 = arith.addf %14, %18 : vector<16x128xf32>
    %c0_7 = arith.constant 0 : index
    %c0_8 = arith.constant 0 : index
    %20 = vector.load %arg5[%c0_7, %c0_8] : memref<16x128xf32, #tpu.memory_space<vmem>>, vector<16x128xf32>
    tpu.vector_store %arg5[%c0_7, %c0_8], %19 {strides = array<i32>} : memref<16x128xf32, #tpu.memory_space<vmem>>, vector<16x128xf32>,
    %c0_i32_9 = arith.constant 0 : i32
    %21 = arith.cmpi eq, %arg1, %c0_i32_9 : i32
    %22 = arith.extui %21 : i1 to i32
    %c0_i32_10 = arith.constant 0 : i32
    %23 = arith.cmpi ne, %22, %c0_i32_10 : i32
    scf.if %23 {
      %c0_11 = arith.constant 0 : index
      %c0_12 = arith.constant 0 : index
      %24 = vector.load %arg5[%c0_11, %c0_12] : memref<16x128xf32, #tpu.memory_space<vmem>>, vector<16x128xf32>
      %cst_13 = arith.constant dense<0.000000e+00> : vector<128xf32>
      %25 = vector.multi_reduction <add>, %24, %cst_13 [0] : vector<16x128xf32> to vector<128xf32>
      %26 = vector.shape_cast %25 : vector<128xf32> to vector<1x128xf32>
      %27 = vector.shape_cast %26 : vector<1x128xf32> to vector<1x1x128xf32>
      %c0_14 = arith.constant 0 : index
      %c0_15 = arith.constant 0 : index
      %c0_16 = arith.constant 0 : index
      %28 = vector.load %arg4[%c0_14, %c0_15, %c0_16] : memref<1x1x128xf32, #tpu.memory_space<vmem>>, vector<1x1x128xf32>
      tpu.vector_store %arg4[%c0_14, %c0_15, %c0_16], %27 {strides = array<i32>} : memref<1x1x128xf32, #tpu.memory_space<vmem>>, vector<1x1x128xf32>,
    } else {
    }
    return
  }
  func.func @transform_0(%arg0: i32, %arg1: i32) -> (i32, i32) {
    %c1_i32 = arith.constant 1 : i32
    %0 = arith.muli %arg0, %c1_i32 : i32
    %1 = arith.addi %0, %arg1 : i32
    %c0_i32 = arith.constant 0 : i32
    %2 = arith.minsi %1, %c0_i32 : i32
    %c0_i32_0 = arith.constant 0 : i32
    %c0_i32_1 = arith.constant 0 : i32
    return %2, %c0_i32_0 : i32, i32
  }
  func.func @transform_1(%arg0: i32, %arg1: i32) -> (i32, i32) {
    %c1_i32 = arith.constant 1 : i32
    %0 = arith.muli %arg0, %c1_i32 : i32
    %1 = arith.addi %0, %arg1 : i32
    %c0_i32 = arith.constant 0 : i32
    %2 = arith.minsi %1, %c0_i32 : i32
    %c0_i32_0 = arith.constant 0 : i32
    %c0_i32_1 = arith.constant 0 : i32
    return %2, %c0_i32_0 : i32, i32
  }
  func.func @transform_2(%arg0: i32, %arg1: i32) -> (i32, i32, i32) {
    %c0_i32 = arith.constant 0 : i32
    %c0_i32_0 = arith.constant 0 : i32
    %c0_i32_1 = arith.constant 0 : i32
    return %arg0, %c0_i32, %c0_i32_0 : i32, i32, i32
  }
}

</mosaic_0001>

<llo_original>
// kernel: tpu_custom_call.1
$region0: #{tpu_custom_call.1}
  #allocation0 [shape = 'u32[]', space=smem, size = 0x4, offset = 0x4, fixed_abs, tag = 'smem constant byte address 0x4 - core index']
  #allocation1 [shape = 'u32[144,128]{1,0:T(1,128)}', space=vmem, size = 0x12000, scoped, tag = 'internal scratch']
  #allocation2 [shape = 'f32[16,128]{1,0:T(8,128)}', space=vmem, size = 0x2000, scoped, tag = 'scratch operand']
  %s0 = inlined_call_operand.hbm [shape: f32[16,128], index: 0, kind: input, shape index: {}]
  %s1 = inlined_call_operand.hbm [shape: f32[16,128], index: 1, kind: input, shape index: {}]
  %s2 = inlined_call_operand.hbm [shape: f32[2,1,128], index: 2, kind: output, shape index: {}]
  %s3 = sld [smem:[#allocation0]]
  $region57: #{tpu_custom_call.1} parent=0
    _
  %s5 = ssub.s32 1, %s3
  %s6 = scalar_select 0, %s5, %s3
  $region1: #{tpu_custom_call.1} parent=0
    #allocation3 [shape = 'u8[16384]{0}', space=vmem, size = 0x4000, scoped, tag = 'input window, operand 0']
    #allocation4 [shape = 's32[2]{0}', space=sflag, size = 0x8, scoped, tag = 'scoped memory for tpu_custom_call.1']
    #allocation5 [shape = 's32[2]{0}', space=sflag, size = 0x8, scoped, tag = 'scoped memory for tpu_custom_call.1']
    #allocation6 [shape = 'u8[16384]{0}', space=vmem, size = 0x4000, scoped, tag = 'input window, operand 1']
    #allocation7 [shape = 's32[2]{0}', space=sflag, size = 0x8, scoped, tag = 'scoped memory for tpu_custom_call.1']
    #allocation8 [shape = 'u8[1024]{0}', space=vmem, size = 0x400, scoped, tag = 'output window, operand 0']
    %7 = vsyncpa [#allocation4], 0
    %s8 = scalar_lea.sflag [#allocation4], 1
    %9 = vsyncpa %s8, 0
    %10 = vsyncpa [#allocation7], 0
    %s11 = scalar_lea.sflag [#allocation7], 1
    %12 = vsyncpa %s11, 0
    %13 = vsyncpa [#allocation5], 0
    %s14 = scalar_lea.sflag [#allocation5], 1
    %15 = vsyncpa %s14, 0
    loop: start=0, step=1, limit=4
    $region2: #{tpu_custom_call.1} parent=1 // loop_pre_header
      _
    $region3: #{tpu_custom_call.1} parent=1 // loop_header
      %s17 = sphi 0, %s21
      %p18 = scmp.ge.s32.totalorder %s17, 4
      %s24 = sphi 0, %s36
      %s25 = sphi 0, %s32
      %s26 = sphi 0, %s24
      %s27 = sphi 0, %s25
      %s28 = sphi 0, %s26
      %s29 = sphi 0, %s27
      %s45 = sphi 0, %s47
      %s48 = sphi 0, %s45
      %s49 = sphi 0, %s48
      %s65 = sphi 0, %s49
      %s77 = sphi 0, %s79
      %s80 = sphi 0, %s77
      %s81 = sphi 0, %s80
      %s97 = sphi 0, %s81
      %s103 = sphi 0, %s105
      %s106 = sphi 0, %s103
      %s107 = sphi 0, %s106
      %s123 = sphi 0, %s107
    $region4: #{tpu_custom_call.1} parent=1 // loop_header_branch
      %20 = sbr.rel (%p18) target = $region8
    $region5: #{tpu_custom_call.1} parent=1 // loop_body
      %s22 = ssub.s32 %s17, 1
      %s23 = ssub.s32 %s17, 2
      %s30 = sadd.s32 1, %s25
      %p31 = scmp.ge.s32.totalorder %s30, 1
      %s32 = scalar_select %p31, 0, %s30
      %s33 = sadd.s32 1, %s24
      %s34 = scalar_select %p31, %s33, %s24
      %p35 = scmp.ge.s32.totalorder %s34, 2
      %s36 = scalar_select %p35, 0, %s34
      %s37 = sadd.s32 %s24, %s25
      %p38 = scmp.lt.s32.totalorder %s37, 0
      %s39 = scalar_select %p38, %s37, 0
      %s40 = sadd.s32 %s36, %s32
      %p41 = scmp.lt.s32.totalorder %s40, 0
      %s42 = scalar_select %p41, %s40, 0
      %s43 = ssub.s32 %s39, %s42
      %p44 = scmp.eq.s32.totalorder %s43, 0
      %s46 = sadd.s32 %s45, 1
      %s47 = scalar_select %p44, %s45, %s46
      %p50 = pneg %p44
      %p51 = scmp.eq.s32.totalorder %s17, 1
      %p52 = por %p50, %p51
      %p53 = scmp.ne.s32.totalorder %s45, %s48
      %p54 = scmp.eq.s32.totalorder %s17, 0
      %p55 = por %p53, %p54
      %p56 = scmp.ne.s32.totalorder %s45, %s48
      %p57 = scmp.eq.s32.totalorder %s22, 1
      %p58 = por %p56, %p57
      %p59 = scmp.ne.s32.totalorder %s48, %s49
      %p60 = scmp.eq.s32.totalorder %s22, 0
      %p61 = por %p59, %p60
      %p62 = scmp.ne.s32.totalorder %s48, %s49
      %p63 = scmp.eq.s32.totalorder %s23, 1
      %p64 = por %p62, %p63
      %p66 = scmp.ne.s32.totalorder %s49, %s65
      %p67 = scmp.eq.s32.totalorder %s23, 0
      %p68 = por %p66, %p67
      %s69 = sadd.s32 %s24, %s25
      %p70 = scmp.lt.s32.totalorder %s69, 0
      %s71 = scalar_select %p70, %s69, 0
      %s72 = sadd.s32 %s36, %s32
      %p73 = scmp.lt.s32.totalorder %s72, 0
      %s74 = scalar_select %p73, %s72, 0
      %s75 = ssub.s32 %s71, %s74
      %p76 = scmp.eq.s32.totalorder %s75, 0
      %s78 = sadd.s32 %s77, 1
      %s79 = scalar_select %p76, %s77, %s78
      %p82 = pneg %p76
      %p83 = scmp.eq.s32.totalorder %s17, 1
      %p84 = por %p82, %p83
      %p85 = scmp.ne.s32.totalorder %s77, %s80
      %p86 = scmp.eq.s32.totalorder %s17, 0
      %p87 = por %p85, %p86
      %p88 = scmp.ne.s32.totalorder %s77, %s80
      %p89 = scmp.eq.s32.totalorder %s22, 1
      %p90 = por %p88, %p89
      %p91 = scmp.ne.s32.totalorder %s80, %s81
      %p92 = scmp.eq.s32.totalorder %s22, 0
      %p93 = por %p91, %p92
      %p94 = scmp.ne.s32.totalorder %s80, %s81
      %p95 = scmp.eq.s32.totalorder %s23, 1
      %p96 = por %p94, %p95
      %p98 = scmp.ne.s32.totalorder %s81, %s97
      %p99 = scmp.eq.s32.totalorder %s23, 0
      %p100 = por %p98, %p99
      %s101 = ssub.s32 %s24, %s36
      %p102 = scmp.eq.s32.totalorder %s101, 0
      %s104 = sadd.s32 %s103, 1
      %s105 = scalar_select %p102, %s103, %s104
      %p108 = pneg %p102
      %p109 = scmp.eq.s32.totalorder %s17, 1
      %p110 = por %p108, %p109
      %p111 = scmp.ne.s32.totalorder %s103, %s106
      %p112 = scmp.eq.s32.totalorder %s17, 0
      %p113 = por %p111, %p112
      %p114 = scmp.ne.s32.totalorder %s103, %s106
      %p115 = scmp.eq.s32.totalorder %s22, 1
      %p116 = por %p114, %p115
      %p117 = scmp.ne.s32.totalorder %s106, %s107
      %p118 = scmp.eq.s32.totalorder %s22, 0
      %p119 = por %p117, %p118
      %p120 = scmp.ne.s32.totalorder %s106, %s107
      %p121 = scmp.eq.s32.totalorder %s23, 1
      %p122 = por %p120, %p121
      %p124 = scmp.ne.s32.totalorder %s107, %s123
      %p125 = scmp.eq.s32.totalorder %s23, 0
      %p126 = por %p124, %p125
      %p127 = scmp.le.s32.totalorder 1, %s17
      %p128 = scmp.lt.s32.totalorder %s17, 3
      %p129 = pnand %p127, %p128
      %p130 = pneg %p129
      // Predicated region
      $region9: #{tpu_custom_call.1} parent=5 // pred_check
        _
      $region10: #{tpu_custom_call.1} parent=5 // pred_check_branch
        %132 = sbr.rel (%p129) target = $region12
      $region11: #{tpu_custom_call.1} parent=5 // pred_region
        %s133 = ssub.s32 %s17, 1
      $region12: #{tpu_custom_call.1} parent=5 // pred_fallthru
        _
      %p134 = scmp.lt.s32.totalorder %s17, 2
      // Predicated region
      $region13: #{tpu_custom_call.1} parent=5 // pred_check
        %p135 = pneg %p134
      $region14: #{tpu_custom_call.1} parent=5 // pred_check_branch
        %137 = sbr.rel (%p135) target = $region16
      $region15: #{tpu_custom_call.1} parent=5 // pred_region
        // Predicated region
        $region17: #{tpu_custom_call.1} parent=15 // pred_check
          %p138 = pneg %p55
        $region18: #{tpu_custom_call.1} parent=15 // pred_check_branch
          %140 = sbr.rel (%p138) target = $region20
        $region19: #{tpu_custom_call.1} parent=15 // pred_region
          %s141 = sand.u32 %s45, 1
          %s142 = scalar_lea.sflag [#allocation4], %s141
          %s143 = sand.u32 %s45, 1
          %s144 = smul.addr %s143, 16
          %s145 = scalar_lea.vmem [#allocation3], %s144
          %s146 = sadd.s32 %s24, %s25
          %p147 = scmp.lt.s32.totalorder %s146, 0
          %s148 = scalar_select %p147, %s146, 0
          %s149 = smul.u32 2, %s148
          %s151 = ssub.s32 256, 256
          %152 = vsyncadd %s142, %s151
          %s153 = smul.addr %s149, 128
          %s154 = scalar_lea.hbm %s0, %s153
          %s155 = sshll.u32 %s145, 4
          %s156 = int_to_ptr.vmem [resolvable:$true] %s155
          %161 = dma.hbm_to_vmem [thread:$0]  %s154, 256, %s156, %s142, 128, 128, 8
        $region20: #{tpu_custom_call.1} parent=15 // pred_fallthru
          _
        // Predicated region
        $region21: #{tpu_custom_call.1} parent=15 // pred_check
          %p162 = pneg %p87
        $region22: #{tpu_custom_call.1} parent=15 // pred_check_branch
          %164 = sbr.rel (%p162) target = $region24
        $region23: #{tpu_custom_call.1} parent=15 // pred_region
          %s165 = sand.u32 %s77, 1
          %s166 = scalar_lea.sflag [#allocation7], %s165
          %s167 = sand.u32 %s77, 1
          %s168 = smul.addr %s167, 16
          %s169 = scalar_lea.vmem [#allocation6], %s168
          %s170 = sadd.s32 %s24, %s25
          %p171 = scmp.lt.s32.totalorder %s170, 0
          %s172 = scalar_select %p171, %s170, 0
          %s173 = smul.u32 2, %s172
          %s175 = ssub.s32 256, 256
          %176 = vsyncadd %s166, %s175
          %s177 = smul.addr %s173, 128
          %s178 = scalar_lea.hbm %s1, %s177
          %s179 = sshll.u32 %s169, 4
          %s180 = int_to_ptr.vmem [resolvable:$true] %s179
          %185 = dma.hbm_to_vmem [thread:$0]  %s178, 256, %s180, %s166, 128, 128, 8
        $region24: #{tpu_custom_call.1} parent=15 // pred_fallthru
          _
      $region16: #{tpu_custom_call.1} parent=5 // pred_fallthru
        _
      %p186 = scmp.le.s32.totalorder 1, %s17
      %p187 = scmp.lt.s32.totalorder %s17, 3
      %p188 = pnand %p186, %p187
      %p189 = pneg %p188
      // Predicated region
      $region25: #{tpu_custom_call.1} parent=5 // pred_check
        _
      $region26: #{tpu_custom_call.1} parent=5 // pred_check_branch
        %191 = sbr.rel (%p188) target = $region28
      $region27: #{tpu_custom_call.1} parent=5 // pred_region
        %s192 = ssub.s32 %s17, 1
        %s193 = sand.u32 %s48, 1
        %s194 = scalar_lea.sflag [#allocation4], %s193
        %s195 = sand.u32 %s48, 1
        %s196 = smul.addr %s195, 16
        %s197 = scalar_lea.vmem [#allocation3], %s196
        // Predicated region
        $region29: #{tpu_custom_call.1} parent=27 // pred_check
          %p198 = pneg %p61
        $region30: #{tpu_custom_call.1} parent=27 // pred_check_branch
          %200 = sbr.rel (%p198) target = $region32
        $region31: #{tpu_custom_call.1} parent=27 // pred_region
          %201 = dma.done %s194, 256
        $region32: #{tpu_custom_call.1} parent=27 // pred_fallthru
          _
        %s202 = sand.u32 %s80, 1
        %s203 = scalar_lea.sflag [#allocation7], %s202
        %s204 = sand.u32 %s80, 1
        %s205 = smul.addr %s204, 16
        %s206 = scalar_lea.vmem [#allocation6], %s205
        // Predicated region
        $region33: #{tpu_custom_call.1} parent=27 // pred_check
          %p207 = pneg %p93
        $region34: #{tpu_custom_call.1} parent=27 // pred_check_branch
          %209 = sbr.rel (%p207) target = $region36
        $region35: #{tpu_custom_call.1} parent=27 // pred_region
          %210 = dma.done %s203, 256
        $region36: #{tpu_custom_call.1} parent=27 // pred_fallthru
          _
        %s211 = sand.u32 %s48, 1
        %s212 = scalar_lea.sflag [#allocation4], %s211
        %s213 = sand.u32 %s48, 1
        %s214 = smul.addr %s213, 16
        %s215 = scalar_lea.vmem [#allocation3], %s214
        %p216 = pneg %p61
        %p217 = pneg %p58
        %s218 = sand.u32 %s80, 1
        %s219 = scalar_lea.sflag [#allocation7], %s218
        %s220 = sand.u32 %s80, 1
        %s221 = smul.addr %s220, 16
        %s222 = scalar_lea.vmem [#allocation6], %s221
        %p223 = pneg %p93
        %p224 = pneg %p90
        %p225 = pneg %p119
        %p226 = pneg %p116
        %s227 = sand.u32 %s106, 1
        %s228 = scalar_lea.sflag [#allocation5], %s227
        %s229 = sand.u32 %s106, 1
        %s230 = scalar_lea.vmem [#allocation8], %s229
        %s231 = sadd.s32 %s26, %s27
        %p232 = scmp.lt.s32.totalorder %s231, 0
        %s233 = scalar_select %p232, %s231, 0
        %s234 = smul.u32 2, %s233
        %s235 = sadd.s32 %s26, %s27
        %p236 = scmp.lt.s32.totalorder %s235, 0
        %s237 = scalar_select %p236, %s235, 0
        %s238 = smul.u32 2, %s237
        %p239 = scmp.eq.s32.totalorder %s27, 0
        // Predicated region
        $region37: #{tpu_custom_call.1} parent=27 // pred_check
          %p240 = pneg %p239
        $region38: #{tpu_custom_call.1} parent=27 // pred_check_branch
          %242 = sbr.rel (%p240) target = $region40
        $region39: #{tpu_custom_call.1} parent=27 // pred_region
          %243 = vst [vmem:[#allocation2] sm:$0xff] 0.0
          %244 = vst [vmem:[#allocation2 + $0x8] sm:$0xff] 0.0
        $region40: #{tpu_custom_call.1} parent=27 // pred_fallthru
          _
        %s245 = sadd.s32 %s26, %s27
        %s246 = smul.u32 %s245, 16
        %s247 = ssub.s32 16, %s246
        %v248 = vlaneseq
        %v249 = vshrl.u32 %v248, 7
        %v250 = vadd.s32 %v249, 8
        %v251 = vstv %s247
        %vm252 = vcmp.lt.s32.totalorder %v249, %v251
        %vm253 = vcmp.lt.s32.totalorder %v250, %v251
        %v254 = vld [vmem:[%s197] sm:$0xff]
        %v255 = vld [vmem:[%s197 + $0x8] sm:$0xff]
        %v256 = vld [vmem:[%s206] sm:$0xff]
        %v257 = vld [vmem:[%s206 + $0x8] sm:$0xff]
        %v258 = vsub.f32 %v254, %v256
        %v259 = vsub.f32 %v255, %v257
        %v260 = vand.u32 2147483647, %v258
        %v261 = vand.u32 2147483647, %v259
        %v262 = vld [vmem:[#allocation2] sm:$0xff]
        %v263 = vld [vmem:[#allocation2 + $0x8] sm:$0xff]
        %v264 = vsel %vm252, 1, 0
        %v265 = vsel %vm253, 1, 0
        %vm266 = vcmp.eq.s32.totalorder %v264, 1
        %vm267 = vcmp.eq.s32.totalorder %v265, 1
        %v268 = vsel %vm266, %v260, 0.0
        %v269 = vsel %vm267, %v261, 0.0
        %v270 = vadd.f32 %v262, %v268
        %v271 = vadd.f32 %v263, %v269
        %272 = vst [vmem:[#allocation2] sm:$0xff] %v270
        %273 = vst [vmem:[#allocation2 + $0x8] sm:$0xff] %v271
        // Predicated region
        $region41: #{tpu_custom_call.1} parent=27 // pred_check
          %p274 = pneg %p239
        $region42: #{tpu_custom_call.1} parent=27 // pred_check_branch
          %276 = sbr.rel (%p274) target = $region44
        $region43: #{tpu_custom_call.1} parent=27 // pred_region
          %v277 = vld [vmem:[#allocation2] sm:$0xff]
          %v278 = vld [vmem:[#allocation2 + $0x8] sm:$0xff]
          %v279 = vadd.f32 %v277, %v278
          %v280 = vrot.slane %v279, 4
          %v281 = vadd.f32 %v279, %v280
          %v282 = vrot.slane %v281, 2
          %v283 = vadd.f32 %v281, %v282
          %v284 = vrot.slane %v283, 1
          %v285 = vadd.f32 %v283, %v284
          %286 = vst [vmem:[%s230] sm:$0x1] %v285
        $region44: #{tpu_custom_call.1} parent=27 // pred_fallthru
          _
        %s287 = sand.u32 %s106, 1
        %s288 = scalar_lea.sflag [#allocation5], %s287
        %s289 = sand.u32 %s106, 1
        %s290 = scalar_lea.vmem [#allocation8], %s289
        // Predicated region
        $region45: #{tpu_custom_call.1} parent=27 // pred_check
          %p291 = pneg %p116
        $region46: #{tpu_custom_call.1} parent=27 // pred_check_branch
          %293 = sbr.rel (%p291) target = $region48
        $region47: #{tpu_custom_call.1} parent=27 // pred_region
          %s295 = ssub.s32 16, 16
          %296 = vsyncadd %s288, %s295
          %s297 = smul.addr %s26, 16
          %s298 = scalar_lea.hbm %s2, %s297
          %s300 = sshll.u32 %s290, 4
          %s301 = int_to_ptr.vmem [resolvable:$true] %s300
          %303 = dma.vmem_to_hbm [thread:$0]  %s301, 16, %s298, %s288
        $region48: #{tpu_custom_call.1} parent=27 // pred_fallthru
          _
      $region28: #{tpu_custom_call.1} parent=5 // pred_fallthru
        _
      %p304 = scmp.le.s32.totalorder 2, %s17
      // Predicated region
      $region49: #{tpu_custom_call.1} parent=5 // pred_check
        %p305 = pneg %p304
      $region50: #{tpu_custom_call.1} parent=5 // pred_check_branch
        %307 = sbr.rel (%p305) target = $region52
      $region51: #{tpu_custom_call.1} parent=5 // pred_region
        %s308 = ssub.s32 %s17, 2
        // Predicated region
        $region53: #{tpu_custom_call.1} parent=51 // pred_check
          %p309 = pneg %p122
        $region54: #{tpu_custom_call.1} parent=51 // pred_check_branch
          %311 = sbr.rel (%p309) target = $region56
        $region55: #{tpu_custom_call.1} parent=51 // pred_region
          %s312 = sand.u32 %s107, 1
          %s313 = scalar_lea.sflag [#allocation5], %s312
          %s314 = sand.u32 %s107, 1
          %s315 = scalar_lea.vmem [#allocation8], %s314
          %316 = dma.done %s313, 16
        $region56: #{tpu_custom_call.1} parent=51 // pred_fallthru
          _
      $region52: #{tpu_custom_call.1} parent=5 // pred_fallthru
        _
    $region6: #{tpu_custom_call.1} parent=1 // loop_footer
      %s21 = sadd.s32 1, %s17
    $region7: #{tpu_custom_call.1} parent=1 // loop_footer_branch
      %16 = sbr.rel target = $region3
    $region8: #{tpu_custom_call.1} parent=1 // loop_exit
      _
    %317 = vsyncpa [#allocation4], 1
    %s318 = scalar_lea.sflag [#allocation4], 1
    %319 = vsyncpa %s318, 1
    %320 = vsyncpa [#allocation7], 1
    %s321 = scalar_lea.sflag [#allocation7], 1
    %322 = vsyncpa %s321, 1
    %323 = vsyncpa [#allocation5], 1
    %s324 = scalar_lea.sflag [#allocation5], 1
    %325 = vsyncpa %s324, 1

</llo_original>
